<compile_context>
chip_gen: v6e
topology: v6e:2x2x1
jax: 0.10.0
libtpu: 0.0.40
codegen_flags: <defaults>
</compile_context>

<pallas_src>
import jax
import jax.numpy as jnp
from jax.experimental import pallas as pl
from jax.experimental.pallas import tpu as pltpu

_LANES = 128
# ~2 MiB per buffer: with double-buffered input + output (4 buffers ~ 8 MiB)
# this fits the 16 MiB scoped-VMEM default on v5e and leaves plenty of
# headroom on v6e/v7x while already sitting near the HBM roofline.
_TARGET_BLOCK_BYTES = 2 * 1024 * 1024


def _copy_kernel(x_ref, o_ref):
    # identity copy of the current lane-dense block
    o_ref[...] = x_ref[...]


def _resolve_shape(target_shape, numel):
    """PyTorch-style shape resolution including a single -1 entry."""
    shape = list(target_shape)
    neg = [i for i, s in enumerate(shape) if s == -1]
    assert len(neg) <= 1, "only one dim may be -1"
    if neg:
        known = 1
        for s in shape:
            if s != -1:
                known *= s
        assert known > 0 and numel % known == 0, "invalid reshape"
        shape[neg[0]] = numel // known
    prod = 1
    for s in shape:
        prod *= s
    assert prod == numel, f"cannot reshape {numel} elems into {target_shape}"
    return tuple(shape)


def _block_rows_for(rows, dtype):
    """Dtype-aware block row count: big enough to amortize per-step overhead,
    small enough to fit scoped VMEM on every TPU generation."""
    itemsize = jnp.dtype(dtype).itemsize
    # sublane packing multiple: 8 for 32-bit, 16 for bf16/fp16, 32 for int8/fp8
    sublane_mult = 8 * max(1, 4 // itemsize)
    max_rows = max(sublane_mult, _TARGET_BLOCK_BYTES // (_LANES * itemsize))
    if rows <= max_rows:
        # single block covering the full second-to-last dim (always legal)
        return rows
    # multi-block: keep block rows a multiple of the sublane packing
    return (max_rows // sublane_mult) * sublane_mult


def _pallas_copy_2d(x2d):
    rows, lanes = x2d.shape
    block_rows = _block_rows_for(rows, x2d.dtype)
    grid = (pl.cdiv(rows, block_rows),)
    return pl.pallas_call(
        _copy_kernel,
        out_shape=jax.ShapeDtypeStruct((rows, lanes), x2d.dtype),
        grid_spec=pl.GridSpec(
            grid=grid,
            in_specs=[pl.BlockSpec((block_rows, lanes), lambda i: (i, 0))],
            out_specs=pl.BlockSpec((block_rows, lanes), lambda i: (i, 0)),
        ),
        input_output_aliases={0: 0},
        compiler_params=pltpu.CompilerParams(
            dimension_semantics=("parallel",),
        ),
    )(x2d)


def reshape_pallas(x, shape):
    """Equivalent of Reshape(shape).forward(x)."""
    n = x.size
    target = _resolve_shape(shape, n)

    # Row-major flatten — metadata-only in XLA, matches torch.reshape on
    # contiguous tensors.
    flat = x.reshape(-1)

    if n % _LANES == 0:
        # Fast path: no pad, no post-slice; exactly one HBM read + one write.
        out2d = _pallas_copy_2d(flat.reshape(n // _LANES, _LANES))
        return out2d.reshape(target)

    # Fallback for sizes not divisible by 128 lanes.
    # TODO(synk): dispatch a tiny tail kernel instead of the full-array pad/slice.
    padded_n = pl.cdiv(n, _LANES) * _LANES
    flat_p = jnp.pad(flat, (0, padded_n - n))
    out2d = _pallas_copy_2d(flat_p.reshape(padded_n // _LANES, _LANES))
    return out2d.reshape(-1)[:n].reshape(target)


if __name__ == "__main__":
    key = jax.random.PRNGKey(0)

    # NCHW input, small shapes: 2*4*16*16 = 2048 elements
    x = jax.random.normal(key, (2, 4, 16, 16), dtype=jnp.float32)

    # Reshape module configured like Reshape((2, -1, 16))
    target_shape = (2, -1, 16)
    out = reshape_pallas(x, target_shape)
    out = jax.block_until_ready(out)

    # Correctness check against plain JAX reshape (== torch.reshape semantics)
    ref = jnp.reshape(x, (2, 64, 16))  # 2048 = 2 * 64 * 16
    assert out.shape == ref.shape, (out.shape, ref.shape)
    assert out.dtype == ref.dtype
    assert bool(jnp.array_equal(out, ref))

    # Exercise the non-128-divisible fallback path with a tiny tensor.
    y = jax.random.normal(jax.random.PRNGKey(1), (3, 5, 7), dtype=jnp.float32)
    out2 = jax.block_until_ready(reshape_pallas(y, (-1,)))
    assert bool(jnp.array_equal(out2, y.reshape(-1)))

    print("KERNEL_OK")
</pallas_src>

<mosaic_0001>
module attributes {stable_mosaic.version = 11 : i64} {
  func.func @_copy_kernel(%arg0: i32, %arg1: memref<16x128xf32, #tpu.memory_space<vmem>>, %arg2: memref<16x128xf32, #tpu.memory_space<vmem>>) attributes {dimension_semantics = [#tpu.dimension_semantics<parallel>], iteration_bounds = array<i64: 1>, scalar_prefetch = 0 : i64, scratch_operands = 0 : i64, tpu.core_type = #tpu.core_type<tc>, window_params = [{transform_indices = @transform_0, window_bounds = array<i64: 16, 128>}, {transform_indices = @transform_1, window_bounds = array<i64: 16, 128>}]} {
    %c0 = arith.constant 0 : index
    %c0_0 = arith.constant 0 : index
    %0 = vector.load %arg1[%c0, %c0_0] : memref<16x128xf32, #tpu.memory_space<vmem>>, vector<16x128xf32>
    %c0_1 = arith.constant 0 : index
    %c0_2 = arith.constant 0 : index
    %1 = vector.load %arg2[%c0_1, %c0_2] : memref<16x128xf32, #tpu.memory_space<vmem>>, vector<16x128xf32>
    tpu.vector_store %arg2[%c0_1, %c0_2], %0 {strides = array<i32>} : memref<16x128xf32, #tpu.memory_space<vmem>>, vector<16x128xf32>,
    return
  }
  func.func @transform_0(%arg0: i32) -> (i32, i32) {
    %c0_i32 = arith.constant 0 : i32
    %c0_i32_0 = arith.constant 0 : i32
    return %arg0, %c0_i32 : i32, i32
  }
  func.func @transform_1(%arg0: i32) -> (i32, i32) {
    %c0_i32 = arith.constant 0 : i32
    %c0_i32_0 = arith.constant 0 : i32
    return %arg0, %c0_i32 : i32, i32
  }
}

</mosaic_0001>

<llo_original>
// kernel: tpu_custom_call.1
$region0: #{tpu_custom_call.1}
  #allocation0 [shape = 'u32[]', space=smem, size = 0x4, offset = 0x4, fixed_abs, tag = 'smem constant byte address 0x4 - core index']
  #allocation1 [shape = 'u32[144,128]{1,0:T(1,128)}', space=vmem, size = 0x12000, scoped, tag = 'internal scratch']
  %s0 = inlined_call_operand.hbm [shape: f32[16,128], index: 0, kind: input, shape index: {}, may-alias: {0,1}]
  %s1 = inlined_call_operand.hbm [shape: f32[16,128], index: 1, kind: output, shape index: {}, may-alias: {0,1}]
  %s2 = sld [smem:[#allocation0]]
  $region18: #{tpu_custom_call.1} parent=0
    _
  %s4 = ssub.s32 1, %s2
  %s5 = scalar_select 0, %s4, %s2
  $region1: #{tpu_custom_call.1} parent=0
    #allocation2 [shape = 'u8[8192]{0}', space=vmem, size = 0x2000, scoped, tag = 'input window, operand 0, single buffered']
    #allocation3 [shape = 's32[1]{0}', space=sflag, size = 0x4, scoped, tag = 'scoped memory for tpu_custom_call.1']
    #allocation4 [shape = 's32[1]{0}', space=sflag, size = 0x4, scoped, tag = 'scoped memory for tpu_custom_call.1']
    #allocation5 [shape = 'u8[8192]{0}', space=vmem, size = 0x2000, scoped, tag = 'output window, operand 0, single buffered']
    %6 = vsyncpa [#allocation3], 0
    %7 = vsyncpa [#allocation4], 0
    // Predicated region
    $region2: #{tpu_custom_call.1} parent=1 // pred_check
      _
    $region3: #{tpu_custom_call.1} parent=1 // pred_check_branch
      %9 = sbr.rel (0) target = $region5
    $region4: #{tpu_custom_call.1} parent=1 // pred_region
      %s11 = ssub.s32 256, 256
      %12 = vsyncadd [#allocation3], %s11
      %s13 = sshll.u32 [#allocation2], 4
      %s14 = int_to_ptr.vmem [resolvable:$true] %s13
      %19 = dma.hbm_to_vmem [thread:$0]  %s0, 256, %s14, [#allocation3], 128, 128, 8
    $region5: #{tpu_custom_call.1} parent=1 // pred_fallthru
      _
    // Predicated region
    $region6: #{tpu_custom_call.1} parent=1 // pred_check
      _
    $region7: #{tpu_custom_call.1} parent=1 // pred_check_branch
      %21 = sbr.rel (0) target = $region9
    $region8: #{tpu_custom_call.1} parent=1 // pred_region
      %22 = dma.done [#allocation3], 256
    $region9: #{tpu_custom_call.1} parent=1 // pred_fallthru
      _
    %v23 = vld [vmem:[#allocation2] sm:$0xff]
    %v24 = vld [vmem:[#allocation2 + $0x8] sm:$0xff]
    %25 = vst [vmem:[#allocation5] sm:$0xff] %v23
    %26 = vst [vmem:[#allocation5 + $0x8] sm:$0xff] %v24
    // Predicated region
    $region10: #{tpu_custom_call.1} parent=1 // pred_check
      _
    $region11: #{tpu_custom_call.1} parent=1 // pred_check_branch
      %28 = sbr.rel (0) target = $region13
    $region12: #{tpu_custom_call.1} parent=1 // pred_region
      %s30 = ssub.s32 256, 256
      %31 = vsyncadd [#allocation4], %s30
      %s32 = sshll.u32 [#allocation5], 4
      %s33 = int_to_ptr.vmem [resolvable:$true] %s32
      %38 = dma.vmem_to_hbm [thread:$0]  %s33, 256, %s1, [#allocation4], 128, 128, 8
    $region13: #{tpu_custom_call.1} parent=1 // pred_fallthru
      _
    // Predicated region
    $region14: #{tpu_custom_call.1} parent=1 // pred_check
      _
    $region15: #{tpu_custom_call.1} parent=1 // pred_check_branch
      %40 = sbr.rel (0) target = $region17
    $region16: #{tpu_custom_call.1} parent=1 // pred_region
      %41 = dma.done [#allocation4], 256
    $region17: #{tpu_custom_call.1} parent=1 // pred_fallthru
      _
    %42 = vsyncpa [#allocation3], 1
    %43 = vsyncpa [#allocation4], 1

</llo_original>
